<compile_context>
chip_gen: v7x
topology: tpu7x:2x2x1
jax: 0.10.0
libtpu: 0.0.40
codegen_flags: <defaults>
</compile_context>

<pallas_src>
import math
from functools import partial

import jax
import jax.numpy as jnp
from jax.experimental import pallas as pl
from jax.experimental.pallas import tpu as pltpu


# ---------------------------------------------------------------------------
# Kernel: one (batch, time-tile) grid step
# ---------------------------------------------------------------------------
def _ta_kernel(xw_ref, w_ref, b_ref, o_ref, col_ref, *, starts, tt, c_in):
    # xw_ref : (C_in, TT + halo)  halo-extended activation window (time on lanes)
    # w_ref  : (C_out, K*C_in)    tap-concatenated weights
    # b_ref  : (C_out, 1)         bias, f32
    # o_ref  : (C_out, TT)        output tile (lane-dense stores)
    # col_ref: (K*C_in, TT)       VMEM scratch holding the im2col block
    for k, s in enumerate(starts):                     # K is small & static -> unrolled
        col_ref[k * c_in:(k + 1) * c_in, :] = xw_ref[:, s:s + tt]
    # Single MXU matmul with contraction dim K*C_in (f32 accumulation).
    acc = jnp.dot(w_ref[...], col_ref[...], preferred_element_type=jnp.float32)
    o_ref[...] = (acc + b_ref[...]).astype(o_ref.dtype)


# ---------------------------------------------------------------------------
# Helpers
# ---------------------------------------------------------------------------
def _ta_shifts(kernel_size_2d, unit_size, dilation, K):
    kh, kw = kernel_size_2d
    center = (kh - 1) // 2
    per_group = [(unit_size - kw) * (i - center) for i in range(kh)]
    x_offset = [per_group[k // kw] for k in range(K)]
    pad = (K - 1) // 2
    # tap k samples original time index  t + shift_k
    return [k * dilation - pad + x_offset[k] for k in range(K)], pad


def _round_up(a, b):
    return ((a + b - 1) // b) * b


def _tile_vmem_bytes(tt, halo, c_in, c_out, K, act_bytes):
    """Rough per-grid-step VMEM estimate (double-buffered in/out + scratch)."""
    in_blk = c_in * (tt + halo) * act_bytes
    out_blk = c_out * tt * 4
    w_blk = c_out * K * c_in * act_bytes
    b_blk = c_out * 4
    col = K * c_in * tt * act_bytes
    return 2 * (in_blk + out_blk + w_blk + b_blk) + col


# ---------------------------------------------------------------------------
# Public wrapper
# ---------------------------------------------------------------------------
def ta_layer_forward(x, weight, bias, *, kernel_size_2d, unit_size,
                     stride=1, dilation=1, groups=1,
                     compute_dtype=jnp.bfloat16, time_tile=None,
                     vmem_budget=20 << 20):
    """x: (N, C_in, T) f32, weight: (C_out, C_in, 1, K), bias: (C_out,) -> (N, C_out, T_out)."""
    assert groups == 1, "only groups=1 implemented"   # TODO(synk): grouped deform_conv
    assert stride == 1, "only stride=1 implemented"   # TODO(synk): strided deform_conv
    N, C_in, T = x.shape
    C_out = weight.shape[0]
    K = kernel_size_2d[0] * kernel_size_2d[1]

    shifts, pad = _ta_shifts(kernel_size_2d, unit_size, dilation, K)
    T_out = T + 2 * pad - dilation * (K - 1)
    assert T_out >= 1, "degenerate output length"
    smin, smax = min(shifts), max(shifts)
    halo = smax - smin

    # --- pick the time tile: multiple of 128 (lane-dense output), VMEM-budgeted ---
    act_bytes = jnp.dtype(compute_dtype).itemsize
    t_out_128 = _round_up(T_out, 128)
    if time_tile is None:
        tt = 128
        for cand in (256, 512, 1024):
            if cand <= t_out_128 and \
               _tile_vmem_bytes(cand, halo, C_in, C_out, K, act_bytes) <= vmem_budget:
                tt = cand
    else:
        assert time_tile % 128 == 0 and time_tile > 0
        tt = time_tile
    tt = min(tt, t_out_128)
    n_tiles = pl.cdiv(T_out, tt)
    T_out_p = n_tiles * tt

    # --- zero-pad time so every (tile, tap) window is an in-range static slice ---
    pad_left = max(0, -smin)
    pad_right = max(0, (T_out_p - 1) + smax - (T - 1))
    x_pad = jnp.pad(x, ((0, 0), (0, 0), (pad_left, pad_right))).astype(compute_dtype)

    # --- halo-extended windows, one per time tile: (N, n_tiles, C_in, tt+halo) ---
    W = tt + halo
    base = smin + pad_left                     # >= 0 by construction
    x_win = jnp.stack(
        [x_pad[:, :, base + j * tt: base + j * tt + W] for j in range(n_tiles)],
        axis=1)

    # --- tap-concatenated weights: w2[oc, k*C_in + ic] = weight[oc, ic, 0, k] ---
    w2 = jnp.transpose(weight.reshape(C_out, C_in, K), (0, 2, 1)) \
            .reshape(C_out, K * C_in).astype(compute_dtype)
    b2 = bias.reshape(C_out, 1).astype(jnp.float32)

    starts = tuple(s - smin for s in shifts)   # per-tap offset inside the window
    kernel = partial(_ta_kernel, starts=starts, tt=tt, c_in=C_in)

    est = _tile_vmem_bytes(tt, halo, C_in, C_out, K, act_bytes)
    vmem_limit = int(min(max(16 << 20, 2 * est + (4 << 20)), 64 << 20))

    out = pl.pallas_call(
        kernel,
        out_shape=jax.ShapeDtypeStruct((N, C_out, T_out_p), x.dtype),
        grid=(N, n_tiles),
        in_specs=[
            pl.BlockSpec((None, None, C_in, W), lambda n, j: (n, j, 0, 0)),
            pl.BlockSpec((C_out, K * C_in), lambda n, j: (0, 0)),
            pl.BlockSpec((C_out, 1), lambda n, j: (0, 0)),
        ],
        out_specs=pl.BlockSpec((None, C_out, tt), lambda n, j: (n, 0, j)),
        scratch_shapes=[pltpu.VMEM((K * C_in, tt), compute_dtype)],
        compiler_params=pltpu.CompilerParams(
            dimension_semantics=("parallel", "parallel"),
            vmem_limit_bytes=vmem_limit),
    )(x_win, w2, b2)

    return out[:, :, :T_out] if T_out_p != T_out else out


# ---------------------------------------------------------------------------
# Pure-JAX reference (integer-offset deform_conv) for validation
# ---------------------------------------------------------------------------
def _reference_forward(x, weight, bias, *, kernel_size_2d, unit_size, dilation=1):
    N, C_in, T = x.shape
    C_out = weight.shape[0]
    K = kernel_size_2d[0] * kernel_size_2d[1]
    shifts, pad = _ta_shifts(kernel_size_2d, unit_size, dilation, K)
    T_out = T + 2 * pad - dilation * (K - 1)
    cols = []
    for s in shifts:
        idx = jnp.arange(T_out) + s
        valid = (idx >= 0) & (idx < T)
        g = jnp.where(valid[None, None, :],
                      x[:, :, jnp.clip(idx, 0, T - 1)], 0.0)   # (N, C_in, T_out)
        cols.append(g)
    col = jnp.stack(cols, axis=2)                               # (N, C_in, K, T_out)
    w = weight.reshape(C_out, C_in, K)
    out = jnp.einsum('ncks,ock->nos', col, w,
                     precision=jax.lax.Precision.HIGHEST) + bias[None, :, None]
    return out


def init_ta_params(key, in_channels, out_channels, kernel_size_2d, groups=1):
    """Deterministic param init mirroring TALayer.reset_parameters / bias init."""
    K = kernel_size_2d[0] * kernel_size_2d[1]
    n = in_channels * 1 * K
    stdv = 1.0 / math.sqrt(n)
    fan_in = (in_channels // groups) * 1 * K
    bound = 1.0 / math.sqrt(fan_in)
    kw, kb = jax.random.split(key)
    weight = jax.random.uniform(kw, (out_channels, in_channels // groups, 1, K),
                                jnp.float32, minval=-stdv, maxval=stdv)
    bias = jax.random.uniform(kb, (out_channels,), jnp.float32,
                              minval=-bound, maxval=bound)
    return weight, bias


if __name__ == "__main__":
    key = jax.random.PRNGKey(0)
    k1, k2, k3, k4 = jax.random.split(key, 4)

    # --- config 1: small, single time tile, f32 compute path -----------------
    N, C_in, C_out, T = 2, 8, 16, 32
    ks2d, unit = (3, 3), 8
    x = jax.random.normal(k1, (N, C_in, T), jnp.float32)
    w, b = init_ta_params(k2, C_in, C_out, ks2d)
    out = ta_layer_forward(x, w, b, kernel_size_2d=ks2d, unit_size=unit,
                           compute_dtype=jnp.float32)
    out = jax.block_until_ready(out)
    ref = _reference_forward(x, w, b, kernel_size_2d=ks2d, unit_size=unit)
    assert out.shape == ref.shape == (N, C_out, T)
    assert jnp.allclose(out, ref, atol=1e-3, rtol=1e-3)

    # --- config 2: multi time tile (halo across tiles), bf16 compute path ----
    N2, C_in2, C_out2, T2 = 2, 16, 32, 300
    ks2d2, unit2 = (3, 5), 6
    x2 = jax.random.normal(k3, (N2, C_in2, T2), jnp.float32)
    w2, b2 = init_ta_params(k4, C_in2, C_out2, ks2d2)
    out2 = ta_layer_forward(x2, w2, b2, kernel_size_2d=ks2d2, unit_size=unit2,
                            compute_dtype=jnp.bfloat16, time_tile=128)
    out2 = jax.block_until_ready(out2)
    # Reference on bf16-rounded inputs (kernel's MXU does exact bf16 products
    # with f32 accumulation), so only accumulation-order noise remains.
    x2r = x2.astype(jnp.bfloat16).astype(jnp.float32)
    w2r = w2.astype(jnp.bfloat16).astype(jnp.float32)
    ref2 = _reference_forward(x2r, w2r, b2, kernel_size_2d=ks2d2, unit_size=unit2)
    assert out2.shape == ref2.shape == (N2, C_out2, T2)
    assert jnp.allclose(out2, ref2, atol=1e-2, rtol=1e-2)

    print("KERNEL_OK")
</pallas_src>

<mosaic_0001>
module attributes {stable_mosaic.version = 11 : i64} {
  func.func @_ta_kernel(%arg0: i32, %arg1: i32, %arg2: memref<1x1x8x146xf32, #tpu.memory_space<vmem>>, %arg3: memref<16x72xf32, #tpu.memory_space<vmem>>, %arg4: memref<16x1xf32, #tpu.memory_space<vmem>>, %arg5: memref<1x16x128xf32, #tpu.memory_space<vmem>>, %arg6: memref<72x128xf32, #tpu.memory_space<vmem>>) attributes {dimension_semantics = [#tpu.dimension_semantics<parallel>, #tpu.dimension_semantics<parallel>], iteration_bounds = array<i64: 2, 1>, scalar_prefetch = 0 : i64, scratch_operands = 1 : i64, tpu.core_type = #tpu.core_type<tc>, window_params = [{transform_indices = @transform_0, window_bounds = array<i64: 1, 1, 8, 146>}, {pipeline_mode = #tpu.pipeline_mode<synchronous>, transform_indices = @transform_1, window_bounds = array<i64: 16, 72>}, {pipeline_mode = #tpu.pipeline_mode<synchronous>, transform_indices = @transform_2, window_bounds = array<i64: 16, 1>}, {transform_indices = @transform_3, window_bounds = array<i64: 1, 16, 128>}]} {
    %c0 = arith.constant 0 : index
    %c0_0 = arith.constant 0 : index
    %c0_1 = arith.constant 0 : index
    %c0_2 = arith.constant 0 : index
    %0 = vector.load %arg2[%c0, %c0_0, %c0_1, %c0_2] : memref<1x1x8x146xf32, #tpu.memory_space<vmem>>, vector<1x1x8x128xf32>
    %1 = vector.shape_cast %0 : vector<1x1x8x128xf32> to vector<8x128xf32>
    %c0_3 = arith.constant 0 : index
    %c0_4 = arith.constant 0 : index
    %2 = vector.load %arg6[%c0_3, %c0_4] : memref<72x128xf32, #tpu.memory_space<vmem>>, vector<8x128xf32>
    tpu.vector_store %arg6[%c0_3, %c0_4], %1 {strides = array<i32>} : memref<72x128xf32, #tpu.memory_space<vmem>>, vector<8x128xf32>,
    %c0_5 = arith.constant 0 : index
    %c0_6 = arith.constant 0 : index
    %c0_7 = arith.constant 0 : index
    %c1 = arith.constant 1 : index
    %3 = vector.load %arg2[%c0_5, %c0_6, %c0_7, %c1] : memref<1x1x8x146xf32, #tpu.memory_space<vmem>>, vector<1x1x8x128xf32>
    %4 = vector.shape_cast %3 : vector<1x1x8x128xf32> to vector<8x128xf32>
    %c8 = arith.constant 8 : index
    %c0_8 = arith.constant 0 : index
    %5 = vector.load %arg6[%c8, %c0_8] : memref<72x128xf32, #tpu.memory_space<vmem>>, vector<8x128xf32>
    tpu.vector_store %arg6[%c8, %c0_8], %4 {strides = array<i32>} : memref<72x128xf32, #tpu.memory_space<vmem>>, vector<8x128xf32>,
    %c0_9 = arith.constant 0 : index
    %c0_10 = arith.constant 0 : index
    %c0_11 = arith.constant 0 : index
    %c2 = arith.constant 2 : index
    %6 = vector.load %arg2[%c0_9, %c0_10, %c0_11, %c2] : memref<1x1x8x146xf32, #tpu.memory_space<vmem>>, vector<1x1x8x128xf32>
    %7 = vector.shape_cast %6 : vector<1x1x8x128xf32> to vector<8x128xf32>
    %c16 = arith.constant 16 : index
    %c0_12 = arith.constant 0 : index
    %8 = vector.load %arg6[%c16, %c0_12] : memref<72x128xf32, #tpu.memory_space<vmem>>, vector<8x128xf32>
    tpu.vector_store %arg6[%c16, %c0_12], %7 {strides = array<i32>} : memref<72x128xf32, #tpu.memory_space<vmem>>, vector<8x128xf32>,
    %c0_13 = arith.constant 0 : index
    %c0_14 = arith.constant 0 : index
    %c0_15 = arith.constant 0 : index
    %c8_16 = arith.constant 8 : index
    %9 = vector.load %arg2[%c0_13, %c0_14, %c0_15, %c8_16] : memref<1x1x8x146xf32, #tpu.memory_space<vmem>>, vector<1x1x8x128xf32>
    %10 = vector.shape_cast %9 : vector<1x1x8x128xf32> to vector<8x128xf32>
    %c24 = arith.constant 24 : index
    %c0_17 = arith.constant 0 : index
    %11 = vector.load %arg6[%c24, %c0_17] : memref<72x128xf32, #tpu.memory_space<vmem>>, vector<8x128xf32>
    tpu.vector_store %arg6[%c24, %c0_17], %10 {strides = array<i32>} : memref<72x128xf32, #tpu.memory_space<vmem>>, vector<8x128xf32>,
    %c0_18 = arith.constant 0 : index
    %c0_19 = arith.constant 0 : index
    %c0_20 = arith.constant 0 : index
    %c9 = arith.constant 9 : index
    %12 = vector.load %arg2[%c0_18, %c0_19, %c0_20, %c9] : memref<1x1x8x146xf32, #tpu.memory_space<vmem>>, vector<1x1x8x128xf32>
    %13 = vector.shape_cast %12 : vector<1x1x8x128xf32> to vector<8x128xf32>
    %c32 = arith.constant 32 : index
    %c0_21 = arith.constant 0 : index
    %14 = vector.load %arg6[%c32, %c0_21] : memref<72x128xf32, #tpu.memory_space<vmem>>, vector<8x128xf32>
    tpu.vector_store %arg6[%c32, %c0_21], %13 {strides = array<i32>} : memref<72x128xf32, #tpu.memory_space<vmem>>, vector<8x128xf32>,
    %c0_22 = arith.constant 0 : index
    %c0_23 = arith.constant 0 : index
    %c0_24 = arith.constant 0 : index
    %c10 = arith.constant 10 : index
    %15 = vector.load %arg2[%c0_22, %c0_23, %c0_24, %c10] : memref<1x1x8x146xf32, #tpu.memory_space<vmem>>, vector<1x1x8x128xf32>
    %16 = vector.shape_cast %15 : vector<1x1x8x128xf32> to vector<8x128xf32>
    %c40 = arith.constant 40 : index
    %c0_25 = arith.constant 0 : index
    %17 = vector.load %arg6[%c40, %c0_25] : memref<72x128xf32, #tpu.memory_space<vmem>>, vector<8x128xf32>
    tpu.vector_store %arg6[%c40, %c0_25], %16 {strides = array<i32>} : memref<72x128xf32, #tpu.memory_space<vmem>>, vector<8x128xf32>,
    %c0_26 = arith.constant 0 : index
    %c0_27 = arith.constant 0 : index
    %c0_28 = arith.constant 0 : index
    %c16_29 = arith.constant 16 : index
    %18 = vector.load %arg2[%c0_26, %c0_27, %c0_28, %c16_29] : memref<1x1x8x146xf32, #tpu.memory_space<vmem>>, vector<1x1x8x128xf32>
    %19 = vector.shape_cast %18 : vector<1x1x8x128xf32> to vector<8x128xf32>
    %c48 = arith.constant 48 : index
    %c0_30 = arith.constant 0 : index
    %20 = vector.load %arg6[%c48, %c0_30] : memref<72x128xf32, #tpu.memory_space<vmem>>, vector<8x128xf32>
    tpu.vector_store %arg6[%c48, %c0_30], %19 {strides = array<i32>} : memref<72x128xf32, #tpu.memory_space<vmem>>, vector<8x128xf32>,
    %c0_31 = arith.constant 0 : index
    %c0_32 = arith.constant 0 : index
    %c0_33 = arith.constant 0 : index
    %c17 = arith.constant 17 : index
    %21 = vector.load %arg2[%c0_31, %c0_32, %c0_33, %c17] : memref<1x1x8x146xf32, #tpu.memory_space<vmem>>, vector<1x1x8x128xf32>
    %22 = vector.shape_cast %21 : vector<1x1x8x128xf32> to vector<8x128xf32>
    %c56 = arith.constant 56 : index
    %c0_34 = arith.constant 0 : index
    %23 = vector.load %arg6[%c56, %c0_34] : memref<72x128xf32, #tpu.memory_space<vmem>>, vector<8x128xf32>
    tpu.vector_store %arg6[%c56, %c0_34], %22 {strides = array<i32>} : memref<72x128xf32, #tpu.memory_space<vmem>>, vector<8x128xf32>,
    %c0_35 = arith.constant 0 : index
    %c0_36 = arith.constant 0 : index
    %c0_37 = arith.constant 0 : index
    %c18 = arith.constant 18 : index
    %24 = vector.load %arg2[%c0_35, %c0_36, %c0_37, %c18] : memref<1x1x8x146xf32, #tpu.memory_space<vmem>>, vector<1x1x8x128xf32>
    %25 = vector.shape_cast %24 : vector<1x1x8x128xf32> to vector<8x128xf32>
    %c64 = arith.constant 64 : index
    %c0_38 = arith.constant 0 : index
    %26 = vector.load %arg6[%c64, %c0_38] : memref<72x128xf32, #tpu.memory_space<vmem>>, vector<8x128xf32>
    tpu.vector_store %arg6[%c64, %c0_38], %25 {strides = array<i32>} : memref<72x128xf32, #tpu.memory_space<vmem>>, vector<8x128xf32>,
    %c0_39 = arith.constant 0 : index
    %c0_40 = arith.constant 0 : index
    %27 = vector.load %arg3[%c0_39, %c0_40] : memref<16x72xf32, #tpu.memory_space<vmem>>, vector<16x72xf32>
    %c0_41 = arith.constant 0 : index
    %c0_42 = arith.constant 0 : index
    %28 = vector.load %arg6[%c0_41, %c0_42] : memref<72x128xf32, #tpu.memory_space<vmem>>, vector<72x128xf32>
    %cst = arith.constant dense<0.000000e+00> : vector<16x128xf32>
    %29 = tpu.matmul %27, %28, %cst {dimension_numbers = #tpu.dot_dimension_numbers<[1], [0], [0], [1], [0, 0, 1, 1], [], []>} : vector<16x72xf32>, vector<72x128xf32>, vector<16x128xf32> -> vector<16x128xf32>
    %c0_43 = arith.constant 0 : index
    %c0_44 = arith.constant 0 : index
    %30 = vector.load %arg4[%c0_43, %c0_44] : memref<16x1xf32, #tpu.memory_space<vmem>>, vector<16x1xf32>
    %31 = vector.broadcast %30 : vector<16x1xf32> to vector<16x128xf32>
    %32 = arith.addf %29, %31 : vector<16x128xf32>
    %c0_45 = arith.constant 0 : index
    %c0_46 = arith.constant 0 : index
    %c0_47 = arith.constant 0 : index
    %33 = vector.load %arg5[%c0_45, %c0_46, %c0_47] : memref<1x16x128xf32, #tpu.memory_space<vmem>>, vector<1x16x128xf32>
    %34 = vector.shape_cast %33 : vector<1x16x128xf32> to vector<16x128xf32>
    %35 = vector.shape_cast %32 : vector<16x128xf32> to vector<1x16x128xf32>
    tpu.vector_store %arg5[%c0_45, %c0_46, %c0_47], %35 {strides = array<i32>} : memref<1x16x128xf32, #tpu.memory_space<vmem>>, vector<1x16x128xf32>,
    return
  }
  func.func @transform_0(%arg0: i32, %arg1: i32) -> (i32, i32, i32, i32) {
    %c0_i32 = arith.constant 0 : i32
    %c0_i32_0 = arith.constant 0 : i32
    %c0_i32_1 = arith.constant 0 : i32
    return %arg0, %arg1, %c0_i32, %c0_i32_0 : i32, i32, i32, i32
  }
  func.func @transform_1(%arg0: i32, %arg1: i32) -> (i32, i32) {
    %c0_i32 = arith.constant 0 : i32
    %c0_i32_0 = arith.constant 0 : i32
    %c0_i32_1 = arith.constant 0 : i32
    return %c0_i32, %c0_i32_0 : i32, i32
  }
  func.func @transform_2(%arg0: i32, %arg1: i32) -> (i32, i32) {
    %c0_i32 = arith.constant 0 : i32
    %c0_i32_0 = arith.constant 0 : i32
    %c0_i32_1 = arith.constant 0 : i32
    return %c0_i32, %c0_i32_0 : i32, i32
  }
  func.func @transform_3(%arg0: i32, %arg1: i32) -> (i32, i32, i32) {
    %c0_i32 = arith.constant 0 : i32
    %c0_i32_0 = arith.constant 0 : i32
    return %arg0, %c0_i32, %arg1 : i32, i32, i32
  }
}

</mosaic_0001>

<llo_original>
// kernel: tpu_custom_call.1
$region0: #{tpu_custom_call.1}
  #allocation0 [shape = 'u32[]', space=smem, size = 0x4, offset = 0x4, fixed_abs, tag = 'smem constant byte address 0x4 - core index']
  #allocation1 [shape = 'u32[144,128]{1,0:T(1,128)}', space=vmem, size = 0x12000, scoped, tag = 'internal scratch']
  #allocation2 [shape = 'f32[72,128]{1,0:T(8,128)}', space=vmem, size = 0x9000, scoped, tag = 'scratch operand']
  %s0 = inlined_call_operand.hbm [shape: f32[2,1,8,146], index: 0, kind: input, shape index: {}]
  %s1 = inlined_call_operand.vmem [shape: f32[16,72], index: 1, kind: input, shape index: {}]
  %s2 = inlined_call_operand.vmem [shape: f32[16,1], index: 2, kind: input, shape index: {}]
  %s3 = inlined_call_operand.hbm [shape: f32[2,16,128], index: 3, kind: output, shape index: {}]
  %s4 = sld [smem:[#allocation0]]
  $region49: #{tpu_custom_call.1} parent=0
    _
  %s6 = ssub.s32 1, %s4
  %s7 = scalar_select 0, %s6, %s4
  $region1: #{tpu_custom_call.1} parent=0
    #allocation3 [shape = 'u8[16384]{0}', space=vmem, size = 0x4000, scoped, tag = 'input window, operand 0']
    #allocation4 [shape = 's32[2]{0}', space=sflag, size = 0x8, scoped, tag = 'scoped memory for tpu_custom_call.1']
    #allocation5 [shape = 's32[2]{0}', space=sflag, size = 0x8, scoped, tag = 'scoped memory for tpu_custom_call.1']
    #allocation6 [shape = 'u8[16384]{0}', space=vmem, size = 0x4000, scoped, tag = 'output window, operand 0']
    %8 = vsyncpa [#allocation4], 0
    %s9 = scalar_lea.sflag [#allocation4], 1
    %10 = vsyncpa %s9, 0
    %11 = vsyncpa [#allocation5], 0
    %s12 = scalar_lea.sflag [#allocation5], 1
    %13 = vsyncpa %s12, 0
    loop: start=0, step=1, limit=4
    $region2: #{tpu_custom_call.1} parent=1 // loop_pre_header
      _
    $region3: #{tpu_custom_call.1} parent=1 // loop_header
      %s15 = sphi 0, %s19
      %p16 = scmp.ge.s32.totalorder %s15, 4
      %s22 = sphi 0, %s34
      %s23 = sphi 0, %s30
      %s24 = sphi 0, %s22
      %s25 = sphi 0, %s23
      %s26 = sphi 0, %s24
      %s27 = sphi 0, %s25
      %s39 = sphi 0, %s41
      %s42 = sphi 0, %s39
      %s43 = sphi 0, %s42
      %s59 = sphi 0, %s43
      %s63 = sphi 0, %s63
      %s65 = sphi 0, %s63
      %s66 = sphi 0, %s65
      %s80 = sphi 0, %s66
      %s84 = sphi 0, %s84
      %s86 = sphi 0, %s84
      %s87 = sphi 0, %s86
      %s101 = sphi 0, %s87
      %s109 = sphi 0, %s111
      %s112 = sphi 0, %s109
      %s113 = sphi 0, %s112
      %s129 = sphi 0, %s113
    $region4: #{tpu_custom_call.1} parent=1 // loop_header_branch
      %18 = sbr.rel (%p16) target = $region8
    $region5: #{tpu_custom_call.1} parent=1 // loop_body
      %s20 = ssub.s32 %s15, 1
      %s21 = ssub.s32 %s15, 2
      %s28 = sadd.s32 1, %s23
      %p29 = scmp.ge.s32.totalorder %s28, 1
      %s30 = scalar_select %p29, 0, %s28
      %s31 = sadd.s32 1, %s22
      %s32 = scalar_select %p29, %s31, %s22
      %p33 = scmp.ge.s32.totalorder %s32, 2
      %s34 = scalar_select %p33, 0, %s32
      %s35 = ssub.s32 %s22, %s34
      %s36 = ssub.s32 %s23, %s30
      %s37 = sor.u32 %s35, %s36
      %p38 = scmp.eq.s32.totalorder %s37, 0
      %s40 = sadd.s32 %s39, 1
      %s41 = scalar_select %p38, %s39, %s40
      %p44 = pneg %p38
      %p45 = scmp.eq.s32.totalorder %s15, 1
      %p46 = por %p44, %p45
      %p47 = scmp.ne.s32.totalorder %s39, %s42
      %p48 = scmp.eq.s32.totalorder %s15, 0
      %p49 = por %p47, %p48
      %p50 = scmp.ne.s32.totalorder %s39, %s42
      %p51 = scmp.eq.s32.totalorder %s20, 1
      %p52 = por %p50, %p51
      %p53 = scmp.ne.s32.totalorder %s42, %s43
      %p54 = scmp.eq.s32.totalorder %s20, 0
      %p55 = por %p53, %p54
      %p56 = scmp.ne.s32.totalorder %s42, %s43
      %p57 = scmp.eq.s32.totalorder %s21, 1
      %p58 = por %p56, %p57
      %p60 = scmp.ne.s32.totalorder %s43, %s59
      %p61 = scmp.eq.s32.totalorder %s21, 0
      %p62 = por %p60, %p61
      %s64 = sadd.s32 %s63, 1
      %p67 = scmp.eq.s32.totalorder %s15, 1
      %p68 = scmp.ne.s32.totalorder %s63, %s65
      %p69 = scmp.eq.s32.totalorder %s15, 0
      %p70 = por %p68, %p69
      %p71 = scmp.ne.s32.totalorder %s63, %s65
      %p72 = scmp.eq.s32.totalorder %s20, 1
      %p73 = por %p71, %p72
      %p74 = scmp.ne.s32.totalorder %s65, %s66
      %p75 = scmp.eq.s32.totalorder %s20, 0
      %p76 = por %p74, %p75
      %p77 = scmp.ne.s32.totalorder %s65, %s66
      %p78 = scmp.eq.s32.totalorder %s21, 1
      %p79 = por %p77, %p78
      %p81 = scmp.ne.s32.totalorder %s66, %s80
      %p82 = scmp.eq.s32.totalorder %s21, 0
      %p83 = por %p81, %p82
      %s85 = sadd.s32 %s84, 1
      %p88 = scmp.eq.s32.totalorder %s15, 1
      %p89 = scmp.ne.s32.totalorder %s84, %s86
      %p90 = scmp.eq.s32.totalorder %s15, 0
      %p91 = por %p89, %p90
      %p92 = scmp.ne.s32.totalorder %s84, %s86
      %p93 = scmp.eq.s32.totalorder %s20, 1
      %p94 = por %p92, %p93
      %p95 = scmp.ne.s32.totalorder %s86, %s87
      %p96 = scmp.eq.s32.totalorder %s20, 0
      %p97 = por %p95, %p96
      %p98 = scmp.ne.s32.totalorder %s86, %s87
      %p99 = scmp.eq.s32.totalorder %s21, 1
      %p100 = por %p98, %p99
      %p102 = scmp.ne.s32.totalorder %s87, %s101
      %p103 = scmp.eq.s32.totalorder %s21, 0
      %p104 = por %p102, %p103
      %s105 = ssub.s32 %s22, %s34
      %s106 = ssub.s32 %s23, %s30
      %s107 = sor.u32 %s105, %s106
      %p108 = scmp.eq.s32.totalorder %s107, 0
      %s110 = sadd.s32 %s109, 1
      %s111 = scalar_select %p108, %s109, %s110
      %p114 = pneg %p108
      %p115 = scmp.eq.s32.totalorder %s15, 1
      %p116 = por %p114, %p115
      %p117 = scmp.ne.s32.totalorder %s109, %s112
      %p118 = scmp.eq.s32.totalorder %s15, 0
      %p119 = por %p117, %p118
      %p120 = scmp.ne.s32.totalorder %s109, %s112
      %p121 = scmp.eq.s32.totalorder %s20, 1
      %p122 = por %p120, %p121
      %p123 = scmp.ne.s32.totalorder %s112, %s113
      %p124 = scmp.eq.s32.totalorder %s20, 0
      %p125 = por %p123, %p124
      %p126 = scmp.ne.s32.totalorder %s112, %s113
      %p127 = scmp.eq.s32.totalorder %s21, 1
      %p128 = por %p126, %p127
      %p130 = scmp.ne.s32.totalorder %s113, %s129
      %p131 = scmp.eq.s32.totalorder %s21, 0
      %p132 = por %p130, %p131
      %p133 = scmp.le.s32.totalorder 1, %s15
      %p134 = scmp.lt.s32.totalorder %s15, 3
      %p135 = pnand %p133, %p134
      %p136 = pneg %p135
      // Predicated region
      $region9: #{tpu_custom_call.1} parent=5 // pred_check
        _
      $region10: #{tpu_custom_call.1} parent=5 // pred_check_branch
        %138 = sbr.rel (%p135) target = $region12
      $region11: #{tpu_custom_call.1} parent=5 // pred_region
        %s139 = ssub.s32 %s15, 1
        // Predicated region
        $region13: #{tpu_custom_call.1} parent=11 // pred_check
          %p140 = pneg %p76
        $region14: #{tpu_custom_call.1} parent=11 // pred_check_branch
          %142 = sbr.rel (%p140) target = $region16
        $region15: #{tpu_custom_call.1} parent=11 // pred_region
          _
        $region16: #{tpu_custom_call.1} parent=11 // pred_fallthru
          _
        // Predicated region
        $region17: #{tpu_custom_call.1} parent=11 // pred_check
          %p143 = pneg %p97
        $region18: #{tpu_custom_call.1} parent=11 // pred_check_branch
          %145 = sbr.rel (%p143) target = $region20
        $region19: #{tpu_custom_call.1} parent=11 // pred_region
          _
        $region20: #{tpu_custom_call.1} parent=11 // pred_fallthru
          _
      $region12: #{tpu_custom_call.1} parent=5 // pred_fallthru
        _
      %p146 = scmp.lt.s32.totalorder %s15, 2
      // Predicated region
      $region21: #{tpu_custom_call.1} parent=5 // pred_check
        %p147 = pneg %p146
      $region22: #{tpu_custom_call.1} parent=5 // pred_check_branch
        %149 = sbr.rel (%p147) target = $region24
      $region23: #{tpu_custom_call.1} parent=5 // pred_region
        // Predicated region
        $region25: #{tpu_custom_call.1} parent=23 // pred_check
          %p150 = pneg %p49
        $region26: #{tpu_custom_call.1} parent=23 // pred_check_branch
          %152 = sbr.rel (%p150) target = $region28
        $region27: #{tpu_custom_call.1} parent=23 // pred_region
          %s153 = sand.u32 %s39, 1
          %s154 = scalar_lea.sflag [#allocation4], %s153
          %s155 = sand.u32 %s39, 1
          %s156 = smul.addr %s155, 16
          %s157 = scalar_lea.vmem [#allocation3], %s156
          %s159 = ssub.s32 256, 256
          %160 = vsyncadd %s154, %s159
          %s161 = smul.addr %s23, 2
          %s162 = smul.addr %s22, 2
          %s163 = sadd.s32 %s161, %s162
          %s164 = smul.addr %s163, 128
          %s165 = scalar_lea.hbm %s0, %s164
          %s167 = sshll.u32 %s157, 4
          %s168 = int_to_ptr.vmem [resolvable:$true] %s167
          %170 = dma.hbm_to_vmem [thread:$0]  %s165, 256, %s168, %s154
        $region28: #{tpu_custom_call.1} parent=23 // pred_fallthru
          _
      $region24: #{tpu_custom_call.1} parent=5 // pred_fallthru
        _
      %p171 = scmp.le.s32.totalorder 1, %s15
      %p172 = scmp.lt.s32.totalorder %s15, 3
      %p173 = pnand %p171, %p172
      %p174 = pneg %p173
      // Predicated region
      $region29: #{tpu_custom_call.1} parent=5 // pred_check
        _
      $region30: #{tpu_custom_call.1} parent=5 // pred_check_branch
        %176 = sbr.rel (%p173) target = $region32
      $region31: #{tpu_custom_call.1} parent=5 // pred_region
        %s177 = ssub.s32 %s15, 1
        %s178 = sand.u32 %s42, 1
        %s179 = scalar_lea.sflag [#allocation4], %s178
        %s180 = sand.u32 %s42, 1
        %s181 = smul.addr %s180, 16
        %s182 = scalar_lea.vmem [#allocation3], %s181
        // Predicated region
        $region33: #{tpu_custom_call.1} parent=31 // pred_check
          %p183 = pneg %p55
        $region34: #{tpu_custom_call.1} parent=31 // pred_check_branch
          %185 = sbr.rel (%p183) target = $region36
        $region35: #{tpu_custom_call.1} parent=31 // pred_region
          %186 = dma.done %s179, 256
        $region36: #{tpu_custom_call.1} parent=31 // pred_fallthru
          _
        %s187 = sand.u32 %s42, 1
        %s188 = scalar_lea.sflag [#allocation4], %s187
        %s189 = sand.u32 %s42, 1
        %s190 = smul.addr %s189, 16
        %s191 = scalar_lea.vmem [#allocation3], %s190
        %p192 = pneg %p55
        %p193 = pneg %p52
        %p194 = pneg %p76
        %p195 = pneg %p73
        %p196 = pneg %p97
        %p197 = pneg %p94
        %p198 = pneg %p125
        %p199 = pneg %p122
        %s200 = sand.u32 %s112, 1
        %s201 = scalar_lea.sflag [#allocation5], %s200
        %s202 = sand.u32 %s112, 1
        %s203 = smul.addr %s202, 16
        %s204 = scalar_lea.vmem [#allocation6], %s203
        %v205 = vld [vmem:[%s182] sm:$0xff]
        %206 = vst [vmem:[#allocation2] sm:$0xff] %v205
        %v207 = vld [vmem:[%s182] sm:$0xff]
        %v208 = vld [vmem:[%s182 + $0x8] sm:$0xff]
        %211 = vrot.lane.b32.xlu0 %v207, 127
        %v212 = vpop.permute.xlu0 %211
        %213 = vrot.lane.b32.xlu0 %v208, 127
        %v214 = vpop.permute.xlu0 %213
        %vm215 = vcmask 1039360
        %v216 = vsel %vm215, %v212, %v214
        %218 = vst [vmem:[#allocation2 + $0x8] sm:$0xff] %v216
        %v219 = vld [vmem:[%s182] sm:$0xff]
        %v220 = vld [vmem:[%s182 + $0x8] sm:$0xff]
        %223 = vrot.lane.b32.xlu0 %v219, 126
        %v224 = vpop.permute.xlu0 %223
        %225 = vrot.lane.b32.xlu0 %v220, 126
        %v226 = vpop.permute.xlu0 %225
        %vm227 = vcmask 1031168
        %v228 = vsel %vm227, %v224, %v226
        %230 = vst [vmem:[#allocation2 + $0x10] sm:$0xff] %v228
        %v231 = vld [vmem:[%s182] sm:$0xff]
        %v232 = vld [vmem:[%s182 + $0x8] sm:$0xff]
        %235 = vrot.lane.b32.xlu0 %v231, 120
        %v236 = vpop.permute.xlu0 %235
        %237 = vrot.lane.b32.xlu0 %v232, 120
        %v238 = vpop.permute.xlu0 %237
        %vm239 = vcmask 982016
        %v240 = vsel %vm239, %v236, %v238
        %242 = vst [vmem:[#allocation2 + $0x18] sm:$0xff] %v240
        %v243 = vld [vmem:[%s182] sm:$0xff]
        %v244 = vld [vmem:[%s182 + $0x8] sm:$0xff]
        %247 = vrot.lane.b32.xlu0 %v243, 119
        %v248 = vpop.permute.xlu0 %247
        %249 = vrot.lane.b32.xlu0 %v244, 119
        %v250 = vpop.permute.xlu0 %249
        %vm251 = vcmask 973824
        %v252 = vsel %vm251, %v248, %v250
        %254 = vst [vmem:[#allocation2 + $0x20] sm:$0xff] %v252
        %v255 = vld [vmem:[%s182] sm:$0xff]
        %v256 = vld [vmem:[%s182 + $0x8] sm:$0xff]
        %259 = vrot.lane.b32.xlu0 %v255, 118
        %v260 = vpop.permute.xlu0 %259
        %261 = vrot.lane.b32.xlu0 %v256, 118
        %v262 = vpop.permute.xlu0 %261
        %vm263 = vcmask 965632
        %v264 = vsel %vm263, %v260, %v262
        %266 = vst [vmem:[#allocation2 + $0x28] sm:$0xff] %v264
        %v267 = vld [vmem:[%s182] sm:$0xff]
        %v268 = vld [vmem:[%s182 + $0x8] sm:$0xff]
        %271 = vrot.lane.b32.xlu0 %v267, 112
        %v272 = vpop.permute.xlu0 %271
        %273 = vrot.lane.b32.xlu0 %v268, 112
        %v274 = vpop.permute.xlu0 %273
        %vm275 = vcmask 916480
        %v276 = vsel %vm275, %v272, %v274
        %278 = vst [vmem:[#allocation2 + $0x30] sm:$0xff] %v276
        %v279 = vld [vmem:[%s182] sm:$0xff]
        %v280 = vld [vmem:[%s182 + $0x8] sm:$0xff]
        %283 = vrot.lane.b32.xlu0 %v279, 111
        %v284 = vpop.permute.xlu0 %283
        %285 = vrot.lane.b32.xlu0 %v280, 111
        %v286 = vpop.permute.xlu0 %285
        %vm287 = vcmask 908288
        %v288 = vsel %vm287, %v284, %v286
        %290 = vst [vmem:[#allocation2 + $0x38] sm:$0xff] %v288
        %v291 = vld [vmem:[%s182] sm:$0xff]
        %v292 = vld [vmem:[%s182 + $0x8] sm:$0xff]
        %295 = vrot.lane.b32.xlu0 %v291, 110
        %v296 = vpop.permute.xlu0 %295
        %297 = vrot.lane.b32.xlu0 %v292, 110
        %v298 = vpop.permute.xlu0 %297
        %vm299 = vcmask 900096
        %v300 = vsel %vm299, %v296, %v298
        %302 = vst [vmem:[#allocation2 + $0x40] sm:$0xff] %v300
        %v303 = vld [vmem:[%s1] sm:$0xff]
        %v304 = vld [vmem:[%s1 + $0x8] sm:$0xff]
        %v305 = vld [vmem:[#allocation2] sm:$0xff]
        %v306 = vld [vmem:[#allocation2 + $0x8] sm:$0xff]
        %v307 = vld [vmem:[#allocation2 + $0x10] sm:$0xff]
        %v308 = vld [vmem:[#allocation2 + $0x18] sm:$0xff]
        %v309 = vld [vmem:[#allocation2 + $0x20] sm:$0xff]
        %v310 = vld [vmem:[#allocation2 + $0x28] sm:$0xff]
        %v311 = vld [vmem:[#allocation2 + $0x30] sm:$0xff]
        %v312 = vld [vmem:[#allocation2 + $0x38] sm:$0xff]
        %v313 = vld [vmem:[#allocation2 + $0x40] sm:$0xff]
        %v314 = vld [vmem:[%s2] sm:$0xff]
        %v315 = vld [vmem:[%s2 + $0x8] sm:$0xff]
        %317 = vset.pattern.permute.xlu0 0
        %318 = vperm.xlu0 %317, %v314
        %v319 = vpop.permute.xlu0 %318
        %322 = vset.pattern.permute.xlu0 0
        %323 = vperm.xlu0 %322, %v315
        %v324 = vpop.permute.xlu0 %323
        %vm326 = vcmask 588800
        %v328 = vsel %vm326, %v303, 0
        %v331 = vsel %vm326, %v304, 0
        %333 = vmatprep.subr.mxu0 0.0
        %334 = vmatpush1.msra.mxu0 %v305
        %335 = vmatprep.subr.mxu0 0.0
        %336 = vmatpush1.msra.mxu0 %v306
        %337 = vmatprep.subr.mxu0 0.0
        %338 = vmatpush1.msra.mxu0 %v307
        %339 = vmatprep.subr.mxu0 0.0
        %340 = vmatpush1.msra.mxu0 %v308
        %341 = vmatprep.subr.mxu0 0.0
        %342 = vmatpush1.msra.mxu0 %v309
        %343 = vmatprep.subr.mxu0 0.0
        %344 = vmatpush1.msra.mxu0 %v310
        %345 = vmatprep.subr.mxu0 0.0
        %346 = vmatpush1.msra.mxu0 %v311
        %347 = vmatprep.subr.mxu0 0.0
        %348 = vmatpush1.msra.mxu0 %v312
        %349 = vmatprep.subr.mxu0 0.0
        %350 = vmatpush1.msra.mxu0 %v313
        %351 = vmatprep.subr.mxu0 0.0
        %352 = vmatpush1.msra.mxu0 0.0
        %353 = vmatprep.subr.mxu0 0.0
        %354 = vmatpush1.msra.mxu0 0.0
        %355 = vmatprep.subr.mxu0 0.0
        %356 = vmatpush1.msra.mxu0 0.0
        %357 = vmatprep.subr.mxu0 0.0
        %358 = vmatpush1.msra.mxu0 0.0
        %359 = vmatprep.subr.mxu0 0.0
        %360 = vmatpush1.msra.mxu0 0.0
        %361 = vmatprep.subr.mxu0 0.0
        %362 = vmatpush1.msra.mxu0 0.0
        %363 = vmatprep.subr.mxu0 0.0
        %364 = vmatpush1.msra.mxu0 0.0
        %365 = vmatprep.subr.mxu0 0.0
        %366 = vmatpush1.msra.mxu0 0.0
        %367 = vmatprep.subr.mxu0 0.0
        %368 = vmatpush1.msra.mxu0 0.0
        %369 = vmatprep.subr.mxu0 0.0
        %370 = vmatpush1.msra.mxu0 0.0
        %371 = vmatprep.subr.mxu0 0.0
        %372 = vmatpush1.msra.mxu0 0.0
        %373 = vmatprep.subr.mxu0 0.0
        %374 = vmatpush1.msra.mxu0 0.0
        %375 = vmatprep.subr.mxu0 0.0
        %376 = vmatpush1.msra.mxu0 0.0
        %377 = vmatprep.subr.mxu0 0.0
        %378 = vmatpush1.msra.mxu0 0.0
        %379 = vmatprep.subr.mxu0 0.0
        %380 = vmatpush1.msra.mxu0 0.0
        %381 = vmatprep.subr.mxu0 0.0
        %382 = vmatpush1.msra.mxu0 0.0
        %383 = vmatprep.subr.mxu0 0.0
        %384 = vmatpush1.msra.mxu0 0.0
        %385 = vmatprep.subr.mxu0 0.0
        %386 = vmatpush1.msra.mxu0 0.0
        %387 = vmatprep.subr.mxu0 0.0
        %388 = vmatpush1.msra.mxu0 0.0
        %389 = vmatprep.subr.mxu0 0.0
        %390 = vmatpush1.msra.mxu0 0.0
        %391 = vmatprep.subr.mxu0 0.0
        %392 = vmatpush1.msra.mxu0 0.0
        %393 = vmatprep.subr.mxu0 0.0
        %394 = vmatpush1.msra.mxu0 0.0
        %395 = vmatprep.subr.mxu0 0.0
        %396 = vmatpush1.msra.mxu0 0.0
        %397 = vmatprep.mubr.f32.mxu0 0.0
        %398 = vmatmul.mubr.f32.gmra.mrb[0].mxu0 %v328
        %v399 = vpop.f32.mrb[0].mxu0
        %v400 = vadd.f32 %v319, %v399
        %v401 = vpop.f32.mrb[0].mxu0
        %402 = vmatprep.mubr.f32.mxu0 0.0
        %403 = vmatmul.mubr.f32.gmra.mrb[0].mxu0 %v331
        %v404 = vpop.f32.mrb[0].mxu0
        %v405 = vadd.f32 %v324, %v404
        %v406 = vpop.f32.mrb[0].mxu0
        %407 = vdwg.mxu0
        %408 = vst [vmem:[%s204] sm:$0xff] %v400
        %409 = vst [vmem:[%s204 + $0x8] sm:$0xff] %v405
        %s410 = sand.u32 %s112, 1
        %s411 = scalar_lea.sflag [#allocation5], %s410
        %s412 = sand.u32 %s112, 1
        %s413 = smul.addr %s412, 16
        %s414 = scalar_lea.vmem [#allocation6], %s413
        // Predicated region
        $region37: #{tpu_custom_call.1} parent=31 // pred_check
          %p415 = pneg %p122
        $region38: #{tpu_custom_call.1} parent=31 // pred_check_branch
          %417 = sbr.rel (%p415) target = $region40
        $region39: #{tpu_custom_call.1} parent=31 // pred_region
          %s419 = ssub.s32 256, 256
          %420 = vsyncadd %s411, %s419
          %s421 = smul.addr %s24, 2
          %s422 = sadd.s32 %s25, %s421
          %s423 = smul.addr %s422, 128
          %s424 = scalar_lea.hbm %s3, %s423
          %s425 = sshll.u32 %s414, 4
          %s426 = int_to_ptr.vmem [resolvable:$true] %s425
          %431 = dma.vmem_to_hbm [thread:$0]  %s426, 256, %s424, %s411, 128, 128, 8
        $region40: #{tpu_custom_call.1} parent=31 // pred_fallthru
          _
      $region32: #{tpu_custom_call.1} parent=5 // pred_fallthru
        _
      %p432 = scmp.le.s32.totalorder 2, %s15
      // Predicated region
      $region41: #{tpu_custom_call.1} parent=5 // pred_check
        %p433 = pneg %p432
      $region42: #{tpu_custom_call.1} parent=5 // pred_check_branch
        %435 = sbr.rel (%p433) target = $region44
      $region43: #{tpu_custom_call.1} parent=5 // pred_region
        %s436 = ssub.s32 %s15, 2
        // Predicated region
        $region45: #{tpu_custom_call.1} parent=43 // pred_check
          %p437 = pneg %p128
        $region46: #{tpu_custom_call.1} parent=43 // pred_check_branch
          %439 = sbr.rel (%p437) target = $region48
        $region47: #{tpu_custom_call.1} parent=43 // pred_region
          %s440 = sand.u32 %s113, 1
          %s441 = scalar_lea.sflag [#allocation5], %s440
          %s442 = sand.u32 %s113, 1
          %s443 = smul.addr %s442, 16
          %s444 = scalar_lea.vmem [#allocation6], %s443
          %445 = dma.done %s441, 256
        $region48: #{tpu_custom_call.1} parent=43 // pred_fallthru
          _
      $region44: #{tpu_custom_call.1} parent=5 // pred_fallthru
        _
    $region6: #{tpu_custom_call.1} parent=1 // loop_footer
      %s19 = sadd.s32 1, %s15
    $region7: #{tpu_custom_call.1} parent=1 // loop_footer_branch
      %14 = sbr.rel target = $region3
    $region8: #{tpu_custom_call.1} parent=1 // loop_exit
      _
    %446 = vsyncpa [#allocation4], 1
    %s447 = scalar_lea.sflag [#allocation4], 1
    %448 = vsyncpa %s447, 1
    %449 = vsyncpa [#allocation5], 1
    %s450 = scalar_lea.sflag [#allocation5], 1
    %451 = vsyncpa %s450, 1

</llo_original>
